<compile_context>
chip_gen: v5e
topology: v5e:2x2
jax: 0.10.0
libtpu: 0.0.40
codegen_flags: <defaults>
</compile_context>

<pallas_src>
import math

import jax
import jax.numpy as jnp
from jax.experimental import pallas as pl
from jax.experimental.pallas import tpu as pltpu


def _gelu_tanh(x):
    # "gelu_pytorch_tanh" (starcoder2 default activation): tanh approximation.
    c = math.sqrt(2.0 / math.pi)
    return 0.5 * x * (1.0 + jnp.tanh(c * (x + 0.044715 * x * x * x)))


def _round_up(x, m):
    return ((x + m - 1) // m) * m


def _chip_defaults():
    """Per-generation (tm, tf, vmem_limit_bytes) defaults (see perf notes)."""
    try:
        kind = jax.devices()[0].device_kind.lower()
    except Exception:
        kind = ""
    if "v5 lite" in kind or "v5e" in kind or "v5lite" in kind:
        # v5e: 128 MiB VMEM, ~240 FLOPs/B roofline -> tm=256 is already
        # compute-bound on the bf16 path; keep tf >= 512 to amortize the f32
        # accumulator RMW on the single vst slot.
        return 256, 512, 100 * 1024 * 1024
    if "v6" in kind:
        # v6e: 128 MiB VMEM, ~700 FLOPs/B roofline -> tm=1024 crosses it.
        return 1024, 512, 110 * 1024 * 1024
    # v7x (64 MiB VMEM, ~310 FLOPs/B roofline) and unknown chips: conservative
    # tiling that fits a 64 MiB part with headroom for compiler scratch.
    return 512, 256, 56 * 1024 * 1024


def _pick_tf(F, tf_target):
    """Pick an F tile (multiple of 128). Prefer an exact divisor of F so the
    weights never need per-call padding."""
    tf_target = int(max(128, tf_target))
    t = (min(tf_target, F) // 128) * 128
    while t >= 128:
        if F % t == 0:
            return t, F
        t -= 128
    # Fallback (F not a multiple of 128): pad.  Zero-padded W1 columns / W2
    # rows contribute nothing, so the padding is numerically exact.
    tf = min(tf_target, _round_up(F, 128))
    return tf, _round_up(F, tf)


def _fit_vmem(tm, tf, H, x_bytes, w_bytes, out_bytes, budget, row_mult):
    """Shrink (tf first, then tm) until the double-buffered footprint fits."""

    def footprint(tm_, tf_):
        weights = 2 * 2 * H * tf_ * w_bytes          # W1 (H,tf) + W2 (tf,H), 2 bufs each
        io = 2 * tm_ * H * (x_bytes + out_bytes)     # x / out tiles, 2 bufs each
        acc = tm_ * H * 4                            # resident f32 accumulator
        bias = 4 * (2 * tf_ + H)                     # f32 bias chunks
        return weights + io + acc + bias

    # tf is never shrunk below 256: the acc RMW cost per F step is fixed, so
    # its relative cost scales as 1/tf.  tm is shrunk last since AI ~= tm.
    while footprint(tm, tf) > budget and tf >= 512 and tf % 256 == 0:
        tf //= 2
    while footprint(tm, tf) > budget and tm > row_mult:
        new_tm = max(row_mult, _round_up(tm // 2, row_mult))
        if new_tm == tm:
            break
        tm = new_tm
    return tm, tf


def _mlp_kernel(x_ref, w1_ref, b1_ref, w2_ref, b2_ref, o_ref, acc_ref):
    # x_ref:  (TM, H)     w1_ref: (H, TF)   b1_ref: (1, TF)  f32
    # w2_ref: (TF, H)     b2_ref: (1, H)    f32
    # o_ref:  (TM, H)     acc_ref: (TM, H)  f32 scratch (persists across F steps)
    j = pl.program_id(1)

    @pl.when(j == 0)
    def _():
        acc_ref[...] = jnp.zeros_like(acc_ref)

    # c_fc partial: x @ W1[:, jF] + b1[jF] -- MXU matmul in the operand dtype
    # (bf16-native), f32 accumulation.
    h = jnp.dot(x_ref[...], w1_ref[...],
                preferred_element_type=jnp.float32) + b1_ref[...]

    # activation in f32 (VPU/EUP); correct & fast on all chips.
    h = _gelu_tanh(h)

    # c_proj partial: gelu(...) @ W2[jF, :] accumulated in f32.
    acc_ref[...] += jnp.dot(h.astype(w2_ref.dtype), w2_ref[...],
                            preferred_element_type=jnp.float32)

    @pl.when(j == pl.num_programs(1) - 1)
    def _():
        o_ref[...] = (acc_ref[...] + b2_ref[...]).astype(o_ref.dtype)


def mlp_forward(hidden_states, w1, b1, w2, b2, *, tm=None, tf=None,
                compute_dtype=jnp.bfloat16, vmem_limit_bytes=None,
                weight_buffers=2):
    """Starcoder2 MLP forward: c_proj(gelu_tanh(c_fc(x))).

    hidden_states: [seq, batch, hidden].  w1: [H, F], b1: [F], w2: [F, H],
    b2: [H] (weights stored [in, out], transposed vs torch's [out, in]).

    compute_dtype: matmul-operand dtype -- bf16 (MXU-native) by default;
    biases, gelu and accumulation are always f32.  Pass jnp.float32 / None to
    keep f32 operands.  tm / tf / vmem_limit_bytes default per chip generation.
    """
    S, B, H = hidden_states.shape
    assert w1.shape[0] == H and w2.shape[1] == H and w1.shape[1] == w2.shape[0]
    F = w1.shape[1]
    out_dtype = hidden_states.dtype

    tm_d, tf_d, vmem_d = _chip_defaults()
    tm = tm_d if tm is None else int(tm)
    tf = tf_d if tf is None else int(tf)
    vmem_limit_bytes = vmem_d if vmem_limit_bytes is None else int(vmem_limit_bytes)

    cd = jnp.dtype(compute_dtype) if compute_dtype is not None else jnp.dtype(out_dtype)

    x = hidden_states.reshape(S * B, H).astype(cd)
    M = S * B
    # NOTE: in a real model, cast the weights ONCE at load time; these are
    # no-ops when the stored dtype already matches.  tf is picked from
    # divisors of F so the weights are (almost) never padded per call.
    w1 = w1.astype(cd)
    w2 = w2.astype(cd)

    # ---- tile selection ----------------------------------------------------
    # bf16 packs 2 rows per sublane: use a 16-row multiple for the token tile.
    row_mult = 16 if cd.itemsize < 4 else 8
    tm_eff = min(tm, _round_up(M, row_mult))
    tm_eff = _round_up(max(tm_eff, row_mult), row_mult)

    tf_eff, F_pad = _pick_tf(F, tf)

    tm_eff, tf_eff = _fit_vmem(tm_eff, tf_eff, H,
                               cd.itemsize, cd.itemsize,
                               jnp.dtype(out_dtype).itemsize,
                               vmem_limit_bytes, row_mult)

    M_pad = _round_up(M, tm_eff)
    if M_pad != M:
        x = jnp.pad(x, ((0, M_pad - M), (0, 0)))
    if F_pad != F:  # rare: only when F is not a multiple of 128
        w1 = jnp.pad(w1, ((0, 0), (0, F_pad - F)))
        b1 = jnp.pad(b1, (0, F_pad - F))
        w2 = jnp.pad(w2, ((0, F_pad - F), (0, 0)))

    b1_2d = b1.reshape(1, F_pad).astype(jnp.float32)
    b2_2d = b2.reshape(1, H).astype(jnp.float32)

    grid = (M_pad // tm_eff, F_pad // tf_eff)

    # Optional deeper buffering of the streamed weights once compute-bound.
    if weight_buffers != 2:
        w1_spec = pl.BlockSpec((H, tf_eff), lambda i, j: (0, j),
                               pipeline_mode=pl.Buffered(weight_buffers))
        w2_spec = pl.BlockSpec((tf_eff, H), lambda i, j: (j, 0),
                               pipeline_mode=pl.Buffered(weight_buffers))
    else:
        w1_spec = pl.BlockSpec((H, tf_eff), lambda i, j: (0, j))
        w2_spec = pl.BlockSpec((tf_eff, H), lambda i, j: (j, 0))

    out = pl.pallas_call(
        _mlp_kernel,
        out_shape=jax.ShapeDtypeStruct((M_pad, H), out_dtype),
        grid_spec=pltpu.PrefetchScalarGridSpec(
            num_scalar_prefetch=0,
            grid=grid,
            in_specs=[
                pl.BlockSpec((tm_eff, H), lambda i, j: (i, 0)),   # x tile (resident over j)
                w1_spec,                                          # W1 F-chunk (streamed)
                pl.BlockSpec((1, tf_eff), lambda i, j: (0, j)),   # b1 F-chunk (f32)
                w2_spec,                                          # W2 F-chunk (streamed)
                pl.BlockSpec((1, H), lambda i, j: (0, 0)),        # b2 (f32)
            ],
            out_specs=pl.BlockSpec((tm_eff, H), lambda i, j: (i, 0)),
            scratch_shapes=[pltpu.VMEM((tm_eff, H), jnp.float32)],
        ),
        compiler_params=pltpu.CompilerParams(
            # TODO(synk): on v7x consider pltpu.CORE_PARALLEL on axis 0 and
            # verify the megacore split in the trace.
            dimension_semantics=("parallel", "arbitrary"),
            vmem_limit_bytes=int(vmem_limit_bytes),
        ),
    )(x, w1, b1_2d, w2, b2_2d)

    out = out[:M].reshape(S, B, H)
    return {"hidden_states": out}


def _ref_forward(hidden_states, w1, b1, w2, b2, compute_dtype=None):
    x = hidden_states
    if compute_dtype is not None:
        x = x.astype(compute_dtype)
        w1 = w1.astype(compute_dtype)
        w2 = w2.astype(compute_dtype)
    h = jnp.einsum("sbh,hf->sbf", x, w1,
                   preferred_element_type=jnp.float32,
                   precision=jax.lax.Precision.HIGHEST) + b1.astype(jnp.float32)
    h = _gelu_tanh(h)
    h = h.astype(w2.dtype)
    y = jnp.einsum("sbf,fh->sbh", h, w2,
                   preferred_element_type=jnp.float32,
                   precision=jax.lax.Precision.HIGHEST) + b2.astype(jnp.float32)
    return y.astype(hidden_states.dtype)


if __name__ == "__main__":
    # Small shapes consistent with the module: seq=8, batch=2, hidden=64, d_ff=4*hidden
    SEQ, BATCH, HIDDEN = 8, 2, 64
    D_FF = 4 * HIDDEN

    key = jax.random.PRNGKey(0)
    k_x, k_w1, k_b1, k_w2, k_b2 = jax.random.split(key, 5)

    x = jax.random.normal(k_x, (SEQ, BATCH, HIDDEN), dtype=jnp.float32)
    # Deterministic synthetic parameters (stored as [in, out]).
    w1 = jax.random.normal(k_w1, (HIDDEN, D_FF), dtype=jnp.float32) / math.sqrt(HIDDEN)
    b1 = jax.random.normal(k_b1, (D_FF,), dtype=jnp.float32) * 0.01
    w2 = jax.random.normal(k_w2, (D_FF, HIDDEN), dtype=jnp.float32) / math.sqrt(D_FF)
    b2 = jax.random.normal(k_b2, (HIDDEN,), dtype=jnp.float32) * 0.01

    # --- primary path: bf16 operands (MXU-native), f32 accumulation ---------
    out_bf16 = mlp_forward(x, w1, b1, w2, b2)  # compute_dtype defaults to bf16
    y_bf16 = jax.block_until_ready(out_bf16["hidden_states"])
    y_ref_bf16 = _ref_forward(x, w1, b1, w2, b2, compute_dtype=jnp.bfloat16)
    assert y_bf16.shape == (SEQ, BATCH, HIDDEN)
    assert y_bf16.dtype == x.dtype
    assert jnp.allclose(y_bf16, y_ref_bf16, atol=3e-2, rtol=3e-2), "bf16 mismatch vs reference"

    # --- f32-operand path ----------------------------------------------------
    out_f32 = mlp_forward(x, w1, b1, w2, b2, compute_dtype=jnp.float32)
    y_f32 = jax.block_until_ready(out_f32["hidden_states"])
    y_ref_f32 = _ref_forward(x, w1, b1, w2, b2)
    assert jnp.allclose(y_f32, y_ref_f32, atol=2e-2, rtol=2e-2), "f32 mismatch vs reference"

    print("KERNEL_OK")
</pallas_src>

<mosaic_0001>
module attributes {stable_mosaic.version = 11 : i64} {
  func.func @_mlp_kernel(%arg0: i32, %arg1: i32, %arg2: memref<16x64xbf16, #tpu.memory_space<vmem>>, %arg3: memref<64x256xbf16, #tpu.memory_space<vmem>>, %arg4: memref<1x256xf32, #tpu.memory_space<vmem>>, %arg5: memref<256x64xbf16, #tpu.memory_space<vmem>>, %arg6: memref<1x64xf32, #tpu.memory_space<vmem>>, %arg7: memref<16x64xf32, #tpu.memory_space<vmem>>, %arg8: memref<16x64xf32, #tpu.memory_space<vmem>>) attributes {dimension_semantics = [#tpu.dimension_semantics<parallel>, #tpu.dimension_semantics<arbitrary>], iteration_bounds = array<i64: 1, 1>, scalar_prefetch = 0 : i64, scratch_operands = 1 : i64, tpu.core_type = #tpu.core_type<tc>, window_params = [{transform_indices = @transform_0, window_bounds = array<i64: 16, 64>}, {transform_indices = @transform_1, window_bounds = array<i64: 64, 256>}, {transform_indices = @transform_2, window_bounds = array<i64: 1, 256>}, {transform_indices = @transform_3, window_bounds = array<i64: 256, 64>}, {pipeline_mode = #tpu.pipeline_mode<synchronous>, transform_indices = @transform_4, window_bounds = array<i64: 1, 64>}, {transform_indices = @transform_5, window_bounds = array<i64: 16, 64>}]} {
    %c0_i32 = arith.constant 0 : i32
    %0 = arith.cmpi eq, %arg1, %c0_i32 : i32
    %1 = arith.extui %0 : i1 to i32
    %c0_i32_0 = arith.constant 0 : i32
    %2 = arith.cmpi ne, %1, %c0_i32_0 : i32
    scf.if %2 {
      %cst_19 = arith.constant 0.000000e+00 : f32
      %31 = vector.broadcast %cst_19 : f32 to vector<16x64xf32>
      %c0_20 = arith.constant 0 : index
      %c0_21 = arith.constant 0 : index
      %32 = vector.load %arg8[%c0_20, %c0_21] : memref<16x64xf32, #tpu.memory_space<vmem>>, vector<16x64xf32>
      tpu.vector_store %arg8[%c0_20, %c0_21], %31 {strides = array<i32>} : memref<16x64xf32, #tpu.memory_space<vmem>>, vector<16x64xf32>,
    } else {
    }
    %c0 = arith.constant 0 : index
    %c0_1 = arith.constant 0 : index
    %3 = vector.load %arg2[%c0, %c0_1] : memref<16x64xbf16, #tpu.memory_space<vmem>>, vector<16x64xbf16>
    %c0_2 = arith.constant 0 : index
    %c0_3 = arith.constant 0 : index
    %4 = vector.load %arg3[%c0_2, %c0_3] : memref<64x256xbf16, #tpu.memory_space<vmem>>, vector<64x256xbf16>
    %cst = arith.constant dense<0.000000e+00> : vector<16x256xf32>
    %5 = tpu.matmul %3, %4, %cst {dimension_numbers = #tpu.dot_dimension_numbers<[1], [0], [0], [1], [0, 0, 1, 1], [], []>} : vector<16x64xbf16>, vector<64x256xbf16>, vector<16x256xf32> -> vector<16x256xf32>
    %c0_4 = arith.constant 0 : index
    %c0_5 = arith.constant 0 : index
    %6 = vector.load %arg4[%c0_4, %c0_5] : memref<1x256xf32, #tpu.memory_space<vmem>>, vector<1x256xf32>
    %7 = vector.broadcast %6 : vector<1x256xf32> to vector<16x256xf32>
    %8 = arith.addf %5, %7 : vector<16x256xf32>
    %cst_6 = arith.constant 5.000000e-01 : f32
    %9 = vector.broadcast %cst_6 : f32 to vector<16x256xf32>
    %10 = arith.mulf %9, %8 : vector<16x256xf32>
    %cst_7 = arith.constant 4.471500e-02 : f32
    %11 = vector.broadcast %cst_7 : f32 to vector<16x256xf32>
    %12 = arith.mulf %11, %8 : vector<16x256xf32>
    %13 = arith.mulf %12, %8 : vector<16x256xf32>
    %14 = arith.mulf %13, %8 : vector<16x256xf32>
    %15 = arith.addf %8, %14 : vector<16x256xf32>
    %cst_8 = arith.constant 0.797884583 : f32
    %16 = vector.broadcast %cst_8 : f32 to vector<16x256xf32>
    %17 = arith.mulf %16, %15 : vector<16x256xf32>
    %18 = math.tanh %17 : vector<16x256xf32>
    %cst_9 = arith.constant 1.000000e+00 : f32
    %19 = vector.broadcast %cst_9 : f32 to vector<16x256xf32>
    %20 = arith.addf %19, %18 : vector<16x256xf32>
    %21 = arith.mulf %10, %20 : vector<16x256xf32>
    %c0_10 = arith.constant 0 : index
    %c0_11 = arith.constant 0 : index
    %22 = vector.load %arg8[%c0_10, %c0_11] : memref<16x64xf32, #tpu.memory_space<vmem>>, vector<16x64xf32>
    %23 = arith.truncf %21 : vector<16x256xf32> to vector<16x256xbf16>
    %c0_12 = arith.constant 0 : index
    %c0_13 = arith.constant 0 : index
    %24 = vector.load %arg5[%c0_12, %c0_13] : memref<256x64xbf16, #tpu.memory_space<vmem>>, vector<256x64xbf16>
    %cst_14 = arith.constant dense<0.000000e+00> : vector<16x64xf32>
    %25 = tpu.matmul %23, %24, %cst_14 {dimension_numbers = #tpu.dot_dimension_numbers<[1], [0], [0], [1], [0, 0, 1, 1], [], []>} : vector<16x256xbf16>, vector<256x64xbf16>, vector<16x64xf32> -> vector<16x64xf32>
    %26 = arith.addf %22, %25 : vector<16x64xf32>
    %c0_15 = arith.constant 0 : index
    %c0_16 = arith.constant 0 : index
    %27 = vector.load %arg8[%c0_15, %c0_16] : memref<16x64xf32, #tpu.memory_space<vmem>>, vector<16x64xf32>
    tpu.vector_store %arg8[%c0_15, %c0_16], %26 {strides = array<i32>} : memref<16x64xf32, #tpu.memory_space<vmem>>, vector<16x64xf32>,
    %c0_i32_17 = arith.constant 0 : i32
    %28 = arith.cmpi eq, %arg1, %c0_i32_17 : i32
    %29 = arith.extui %28 : i1 to i32
    %c0_i32_18 = arith.constant 0 : i32
    %30 = arith.cmpi ne, %29, %c0_i32_18 : i32
    scf.if %30 {
      %c0_19 = arith.constant 0 : index
      %c0_20 = arith.constant 0 : index
      %31 = vector.load %arg8[%c0_19, %c0_20] : memref<16x64xf32, #tpu.memory_space<vmem>>, vector<16x64xf32>
      %c0_21 = arith.constant 0 : index
      %c0_22 = arith.constant 0 : index
      %32 = vector.load %arg6[%c0_21, %c0_22] : memref<1x64xf32, #tpu.memory_space<vmem>>, vector<1x64xf32>
      %33 = vector.broadcast %32 : vector<1x64xf32> to vector<16x64xf32>
      %34 = arith.addf %31, %33 : vector<16x64xf32>
      %c0_23 = arith.constant 0 : index
      %c0_24 = arith.constant 0 : index
      %35 = vector.load %arg7[%c0_23, %c0_24] : memref<16x64xf32, #tpu.memory_space<vmem>>, vector<16x64xf32>
      tpu.vector_store %arg7[%c0_23, %c0_24], %34 {strides = array<i32>} : memref<16x64xf32, #tpu.memory_space<vmem>>, vector<16x64xf32>,
    } else {
    }
    return
  }
  func.func @transform_0(%arg0: i32, %arg1: i32) -> (i32, i32) {
    %c0_i32 = arith.constant 0 : i32
    %c0_i32_0 = arith.constant 0 : i32
    return %arg0, %c0_i32 : i32, i32
  }
  func.func @transform_1(%arg0: i32, %arg1: i32) -> (i32, i32) {
    %c0_i32 = arith.constant 0 : i32
    %c0_i32_0 = arith.constant 0 : i32
    return %c0_i32, %arg1 : i32, i32
  }
  func.func @transform_2(%arg0: i32, %arg1: i32) -> (i32, i32) {
    %c0_i32 = arith.constant 0 : i32
    %c0_i32_0 = arith.constant 0 : i32
    return %c0_i32, %arg1 : i32, i32
  }
  func.func @transform_3(%arg0: i32, %arg1: i32) -> (i32, i32) {
    %c0_i32 = arith.constant 0 : i32
    %c0_i32_0 = arith.constant 0 : i32
    return %arg1, %c0_i32 : i32, i32
  }
  func.func @transform_4(%arg0: i32, %arg1: i32) -> (i32, i32) {
    %c0_i32 = arith.constant 0 : i32
    %c0_i32_0 = arith.constant 0 : i32
    %c0_i32_1 = arith.constant 0 : i32
    return %c0_i32, %c0_i32_0 : i32, i32
  }
  func.func @transform_5(%arg0: i32, %arg1: i32) -> (i32, i32) {
    %c0_i32 = arith.constant 0 : i32
    %c0_i32_0 = arith.constant 0 : i32
    return %arg0, %c0_i32 : i32, i32
  }
}

</mosaic_0001>

<llo_original>
// kernel: tpu_custom_call.1
$region0: #{tpu_custom_call.1}
  #allocation0 [shape = 'u32[]', space=smem, size = 0x4, offset = 0x4, fixed_abs, tag = 'smem constant byte address 0x4 - core index']
  #allocation1 [shape = 'u32[72,128]{1,0:T(1,128)}', space=vmem, size = 0x9000, scoped, tag = 'internal scratch']
  #allocation2 [shape = 'f32[16,64]{1,0:T(8,128)}', space=vmem, size = 0x2000, scoped, tag = 'scratch operand']
  %s0 = inlined_call_operand.vmem [shape: bf16[16,64], index: 0, kind: input, shape index: {}]
  %s1 = inlined_call_operand.vmem [shape: bf16[64,256], index: 1, kind: input, shape index: {}]
  %s2 = inlined_call_operand.vmem [shape: f32[1,256], index: 2, kind: input, shape index: {}]
  %s3 = inlined_call_operand.vmem [shape: bf16[256,64], index: 3, kind: input, shape index: {}]
  %s4 = inlined_call_operand.vmem [shape: f32[1,64], index: 4, kind: input, shape index: {}]
  %s5 = inlined_call_operand.hbm [shape: f32[16,64], index: 5, kind: output, shape index: {}]
  %s6 = sld [smem:[#allocation0]]
  $region38: #{tpu_custom_call.1} parent=0
    _
  %s8 = ssub.s32 1, %s6
  %s9 = scalar_select 0, %s8, %s6
  $region1: #{tpu_custom_call.1} parent=0
    #allocation3 [shape = 'u8[8192]{0}', space=vmem, size = 0x2000, scoped, tag = 'output window, operand 0, single buffered']
    #allocation4 [shape = 's32[1]{0}', space=sflag, size = 0x4, scoped, tag = 'scoped memory for tpu_custom_call.1']
    %10 = vsyncpa [#allocation4], 0
    // Predicated region
    $region2: #{tpu_custom_call.1} parent=1 // pred_check
      _
    $region3: #{tpu_custom_call.1} parent=1 // pred_check_branch
      %12 = sbr.rel (0) target = $region5
    $region4: #{tpu_custom_call.1} parent=1 // pred_region
      _
    $region5: #{tpu_custom_call.1} parent=1 // pred_fallthru
      _
    // Predicated region
    $region6: #{tpu_custom_call.1} parent=1 // pred_check
      _
    $region7: #{tpu_custom_call.1} parent=1 // pred_check_branch
      %14 = sbr.rel (0) target = $region9
    $region8: #{tpu_custom_call.1} parent=1 // pred_region
      _
    $region9: #{tpu_custom_call.1} parent=1 // pred_fallthru
      _
    // Predicated region
    $region10: #{tpu_custom_call.1} parent=1 // pred_check
      _
    $region11: #{tpu_custom_call.1} parent=1 // pred_check_branch
      %16 = sbr.rel (0) target = $region13
    $region12: #{tpu_custom_call.1} parent=1 // pred_region
      _
    $region13: #{tpu_custom_call.1} parent=1 // pred_fallthru
      _
    // Predicated region
    $region14: #{tpu_custom_call.1} parent=1 // pred_check
      _
    $region15: #{tpu_custom_call.1} parent=1 // pred_check_branch
      %18 = sbr.rel (0) target = $region17
    $region16: #{tpu_custom_call.1} parent=1 // pred_region
      _
    $region17: #{tpu_custom_call.1} parent=1 // pred_fallthru
      _
    // Predicated region
    $region18: #{tpu_custom_call.1} parent=1 // pred_check
      _
    $region19: #{tpu_custom_call.1} parent=1 // pred_check_branch
      %20 = sbr.rel (0) target = $region21
    $region20: #{tpu_custom_call.1} parent=1 // pred_region
      _
    $region21: #{tpu_custom_call.1} parent=1 // pred_fallthru
      _
    %p22 = scmp.eq.s32.totalorder 0, 0
    // Predicated region
    $region22: #{tpu_custom_call.1} parent=1 // pred_check
      %p23 = pneg %p22
    $region23: #{tpu_custom_call.1} parent=1 // pred_check_branch
      %25 = sbr.rel (%p23) target = $region25
    $region24: #{tpu_custom_call.1} parent=1 // pred_region
      %vm26 = vcmask 523264
      %27 = vst.msk [vmem:[#allocation2] sm:$0xff] %vm26, 0.0
      %28 = vst.msk [vmem:[#allocation2 + $0x8] sm:$0xff] %vm26, 0.0
    $region25: #{tpu_custom_call.1} parent=1 // pred_fallthru
      _
    %v29 = vld [vmem:[%s0] sm:$0xf]
    %v30 = vld [vmem:[%s0 + $0x4] sm:$0xf]
    %v31 = vld [vmem:[%s1] sm:$0xff]
    %v32 = vld [vmem:[%s1 + $0x8] sm:$0xff]
    %v33 = vld [vmem:[%s1 + $0x10] sm:$0xff]
    %v34 = vld [vmem:[%s1 + $0x18] sm:$0xff]
    %v35 = vld [vmem:[%s1 + $0x20] sm:$0xff]
    %v36 = vld [vmem:[%s1 + $0x28] sm:$0xff]
    %v37 = vld [vmem:[%s1 + $0x30] sm:$0xff]
    %v38 = vld [vmem:[%s1 + $0x38] sm:$0xff]
    %v39 = vld [vmem:[%s2] sm:$0x3]
    %v41 = vperm.slane %v39, 0
    %v42 = vperm.slane %v39, 1
    %v47 = vunpack.c.l.b16 %v29
    %v48 = vunpack.c.l.b16 %v30
    %v49 = vpack.c.b16 %v48, %v47
    %v58 = vunpack.c.l.b16 %v31
    %v59 = vunpack.c.h.b16 %v31
    %v60 = vunpack.c.l.b16 %v32
    %v61 = vunpack.c.h.b16 %v32
    %v62 = vunpack.c.l.b16 %v33
    %v63 = vunpack.c.h.b16 %v33
    %v64 = vunpack.c.l.b16 %v34
    %v65 = vunpack.c.h.b16 %v34
    %v66 = vunpack.c.l.b16 %v35
    %v67 = vunpack.c.h.b16 %v35
    %v68 = vunpack.c.l.b16 %v36
    %v69 = vunpack.c.h.b16 %v36
    %v70 = vunpack.c.l.b16 %v37
    %v71 = vunpack.c.h.b16 %v37
    %v72 = vunpack.c.l.b16 %v38
    %v73 = vunpack.c.h.b16 %v38
    %v74 = vpack.c.b16 %v60, %v58
    %v75 = vpack.c.b16 %v61, %v59
    %v76 = vpack.c.b16 %v64, %v62
    %v77 = vpack.c.b16 %v65, %v63
    %v78 = vpack.c.b16 %v68, %v66
    %v79 = vpack.c.b16 %v69, %v67
    %v80 = vpack.c.b16 %v72, %v70
    %v81 = vpack.c.b16 %v73, %v71
    %vm90 = vcmask 523264
    %v92 = vsel %vm90, %v49, 0
    %94 = vmatpush.bf16.msra.mxu0 0
    %95 = vmatpush.bf16.msra.mxu0 0
    %96 = vmatpush.bf16.msra.mxu0 0
    %97 = vmatpush.bf16.msra.mxu0 0
    %98 = vmatpush.bf16.msra.mxu0 %v80
    %99 = vmatpush.bf16.msra.mxu0 %v78
    %100 = vmatpush.bf16.msra.mxu0 %v76
    %101 = vmatpush.bf16.msra.mxu0 %v74
    %102 = vmatmul.bf16.gmra.mxu0 %v92
    %v103 = vpop.f32.mrf.mxu0
    %v104 = vadd.f32 %v41, %v103
    %v105 = vpop.f32.mrf.mxu0
    %v106 = vadd.f32 %v41, %v105
    %107 = vdwg.mxu0
    %108 = vmatpush.bf16.msra.mxu0 0
    %109 = vmatpush.bf16.msra.mxu0 0
    %110 = vmatpush.bf16.msra.mxu0 0
    %111 = vmatpush.bf16.msra.mxu0 0
    %112 = vmatpush.bf16.msra.mxu0 %v81
    %113 = vmatpush.bf16.msra.mxu0 %v79
    %114 = vmatpush.bf16.msra.mxu0 %v77
    %115 = vmatpush.bf16.msra.mxu0 %v75
    %116 = vmatmul.bf16.gmra.mxu0 %v92
    %v117 = vpop.f32.mrf.mxu0
    %v118 = vadd.f32 %v42, %v117
    %v119 = vpop.f32.mrf.mxu0
    %v120 = vadd.f32 %v42, %v119
    %121 = vdwg.mxu0
    %v122 = vmul.f32 %v104, 0.5
    %v123 = vmul.f32 %v118, 0.5
    %v124 = vmul.f32 %v106, 0.5
    %v125 = vmul.f32 %v120, 0.5
    %v126 = vmul.f32 %v104, 0.044715
    %v127 = vmul.f32 %v118, 0.044715
    %v128 = vmul.f32 %v106, 0.044715
    %v129 = vmul.f32 %v120, 0.044715
    %v130 = vmul.f32 %v126, %v104
    %v131 = vmul.f32 %v127, %v118
    %v132 = vmul.f32 %v128, %v106
    %v133 = vmul.f32 %v129, %v120
    %v134 = vmul.f32 %v130, %v104
    %v135 = vmul.f32 %v131, %v118
    %v136 = vmul.f32 %v132, %v106
    %v137 = vmul.f32 %v133, %v120
    %v138 = vadd.f32 %v104, %v134
    %v139 = vadd.f32 %v118, %v135
    %v140 = vadd.f32 %v106, %v136
    %v141 = vadd.f32 %v120, %v137
    %v142 = vmul.f32 %v138, 0.7978846
    %v143 = vmul.f32 %v139, 0.7978846
    %v144 = vmul.f32 %v140, 0.7978846
    %v145 = vmul.f32 %v141, 0.7978846
    %v146 = vtanh.pop %v142
    %v147 = vtanh.pop %v143
    %v148 = vtanh.pop %v144
    %v149 = vtanh.pop %v145
    %v150 = vadd.f32 %v146, 1.0
    %v151 = vadd.f32 %v147, 1.0
    %v152 = vadd.f32 %v148, 1.0
    %v153 = vadd.f32 %v149, 1.0
    %v154 = vmul.f32 %v122, %v150
    %v155 = vmul.f32 %v123, %v151
    %v156 = vmul.f32 %v124, %v152
    %v157 = vmul.f32 %v125, %v153
    %v158 = vld [vmem:[#allocation2] sm:$0xff]
    %v159 = vld [vmem:[#allocation2 + $0x8] sm:$0xff]
    %v160 = vpack.c.bf16 %v156, %v154
    %v161 = vpack.c.bf16 %v157, %v155
    %v162 = vld [vmem:[%s3] sm:$0xf]
    %v163 = vld [vmem:[%s3 + $0x4] sm:$0xf]
    %v164 = vld [vmem:[%s3 + $0x8] sm:$0xf]
    %v165 = vld [vmem:[%s3 + $0xc] sm:$0xf]
    %v166 = vld [vmem:[%s3 + $0x10] sm:$0xf]
    %v167 = vld [vmem:[%s3 + $0x14] sm:$0xf]
    %v168 = vld [vmem:[%s3 + $0x18] sm:$0xf]
    %v169 = vld [vmem:[%s3 + $0x1c] sm:$0xf]
    %v170 = vld [vmem:[%s3 + $0x20] sm:$0xf]
    %v171 = vld [vmem:[%s3 + $0x24] sm:$0xf]
    %v172 = vld [vmem:[%s3 + $0x28] sm:$0xf]
    %v173 = vld [vmem:[%s3 + $0x2c] sm:$0xf]
    %v174 = vld [vmem:[%s3 + $0x30] sm:$0xf]
    %v175 = vld [vmem:[%s3 + $0x34] sm:$0xf]
    %v176 = vld [vmem:[%s3 + $0x38] sm:$0xf]
    %v177 = vld [vmem:[%s3 + $0x3c] sm:$0xf]
    %v178 = vld [vmem:[%s3 + $0x40] sm:$0xf]
    %v179 = vld [vmem:[%s3 + $0x44] sm:$0xf]
    %v180 = vld [vmem:[%s3 + $0x48] sm:$0xf]
    %v181 = vld [vmem:[%s3 + $0x4c] sm:$0xf]
    %v182 = vld [vmem:[%s3 + $0x50] sm:$0xf]
    %v183 = vld [vmem:[%s3 + $0x54] sm:$0xf]
    %v184 = vld [vmem:[%s3 + $0x58] sm:$0xf]
    %v185 = vld [vmem:[%s3 + $0x5c] sm:$0xf]
    %v186 = vld [vmem:[%s3 + $0x60] sm:$0xf]
    %v187 = vld [vmem:[%s3 + $0x64] sm:$0xf]
    %v188 = vld [vmem:[%s3 + $0x68] sm:$0xf]
    %v189 = vld [vmem:[%s3 + $0x6c] sm:$0xf]
    %v190 = vld [vmem:[%s3 + $0x70] sm:$0xf]
    %v191 = vld [vmem:[%s3 + $0x74] sm:$0xf]
    %v192 = vld [vmem:[%s3 + $0x78] sm:$0xf]
    %v193 = vld [vmem:[%s3 + $0x7c] sm:$0xf]
    %v226 = vunpack.c.l.b16 %v162
    %v227 = vunpack.c.l.b16 %v163
    %v228 = vunpack.c.l.b16 %v164
    %v229 = vunpack.c.l.b16 %v165
    %v230 = vunpack.c.l.b16 %v166
    %v231 = vunpack.c.l.b16 %v167
    %v232 = vunpack.c.l.b16 %v168
    %v233 = vunpack.c.l.b16 %v169
    %v234 = vunpack.c.l.b16 %v170
    %v235 = vunpack.c.l.b16 %v171
    %v236 = vunpack.c.l.b16 %v172
    %v237 = vunpack.c.l.b16 %v173
    %v238 = vunpack.c.l.b16 %v174
    %v239 = vunpack.c.l.b16 %v175
    %v240 = vunpack.c.l.b16 %v176
    %v241 = vunpack.c.l.b16 %v177
    %v242 = vunpack.c.l.b16 %v178
    %v243 = vunpack.c.l.b16 %v179
    %v244 = vunpack.c.l.b16 %v180
    %v245 = vunpack.c.l.b16 %v181
    %v246 = vunpack.c.l.b16 %v182
    %v247 = vunpack.c.l.b16 %v183
    %v248 = vunpack.c.l.b16 %v184
    %v249 = vunpack.c.l.b16 %v185
    %v250 = vunpack.c.l.b16 %v186
    %v251 = vunpack.c.l.b16 %v187
    %v252 = vunpack.c.l.b16 %v188
    %v253 = vunpack.c.l.b16 %v189
    %v254 = vunpack.c.l.b16 %v190
    %v255 = vunpack.c.l.b16 %v191
    %v256 = vunpack.c.l.b16 %v192
    %v257 = vunpack.c.l.b16 %v193
    %v258 = vpack.c.b16 %v227, %v226
    %v259 = vpack.c.b16 %v229, %v228
    %v260 = vpack.c.b16 %v231, %v230
    %v261 = vpack.c.b16 %v233, %v232
    %v262 = vpack.c.b16 %v235, %v234
    %v263 = vpack.c.b16 %v237, %v236
    %v264 = vpack.c.b16 %v239, %v238
    %v265 = vpack.c.b16 %v241, %v240
    %v266 = vpack.c.b16 %v243, %v242
    %v267 = vpack.c.b16 %v245, %v244
    %v268 = vpack.c.b16 %v247, %v246
    %v269 = vpack.c.b16 %v249, %v248
    %v270 = vpack.c.b16 %v251, %v250
    %v271 = vpack.c.b16 %v253, %v252
    %v272 = vpack.c.b16 %v255, %v254
    %v273 = vpack.c.b16 %v257, %v256
    %290 = vmatpush.bf16.msra.mxu0 %v265
    %291 = vmatpush.bf16.msra.mxu0 %v264
    %292 = vmatpush.bf16.msra.mxu0 %v263
    %293 = vmatpush.bf16.msra.mxu0 %v262
    %294 = vmatpush.bf16.msra.mxu0 %v261
    %295 = vmatpush.bf16.msra.mxu0 %v260
    %296 = vmatpush.bf16.msra.mxu0 %v259
    %297 = vmatpush.bf16.msra.mxu0 %v258
    %298 = vmatmul.bf16.gmra.mxu0 %v160
    %v299 = vpop.f32.mrf.mxu0
    %v300 = vadd.f32 0.0, %v299
    %v301 = vpop.f32.mrf.mxu0
    %v302 = vadd.f32 0.0, %v301
    %303 = vdwg.mxu0
    %304 = vmatpush.bf16.msra.mxu0 %v273
    %305 = vmatpush.bf16.msra.mxu0 %v272
    %306 = vmatpush.bf16.msra.mxu0 %v271
    %307 = vmatpush.bf16.msra.mxu0 %v270
    %308 = vmatpush.bf16.msra.mxu0 %v269
    %309 = vmatpush.bf16.msra.mxu0 %v268
    %310 = vmatpush.bf16.msra.mxu0 %v267
    %311 = vmatpush.bf16.msra.mxu0 %v266
    %312 = vmatmul.bf16.gmra.mxu0 %v161
    %v313 = vpop.f32.mrf.mxu0
    %v314 = vadd.f32 %v300, %v313
    %v315 = vpop.f32.mrf.mxu0
    %v316 = vadd.f32 %v302, %v315
    %317 = vdwg.mxu0
    %v318 = vadd.f32 %v158, %v314
    %v319 = vadd.f32 %v159, %v316
    %320 = vst.msk [vmem:[#allocation2] sm:$0xff] %vm90, %v318
    %321 = vst.msk [vmem:[#allocation2 + $0x8] sm:$0xff] %vm90, %v319
    // Predicated region
    $region26: #{tpu_custom_call.1} parent=1 // pred_check
      %p322 = pneg %p22
    $region27: #{tpu_custom_call.1} parent=1 // pred_check_branch
      %324 = sbr.rel (%p322) target = $region29
    $region28: #{tpu_custom_call.1} parent=1 // pred_region
      %v325 = vld [vmem:[#allocation2] sm:$0xff]
      %v326 = vld [vmem:[#allocation2 + $0x8] sm:$0xff]
      %v327 = vld [vmem:[%s4] sm:$0x1]
      %v329 = vperm.slane %v327, 0
      %v331 = vadd.f32 %v325, %v329
      %v332 = vadd.f32 %v326, %v329
      %333 = vst.msk [vmem:[#allocation3] sm:$0xff] %vm90, %v331
      %334 = vst.msk [vmem:[#allocation3 + $0x8] sm:$0xff] %vm90, %v332
    $region29: #{tpu_custom_call.1} parent=1 // pred_fallthru
      _
    // Predicated region
    $region30: #{tpu_custom_call.1} parent=1 // pred_check
      _
    $region31: #{tpu_custom_call.1} parent=1 // pred_check_branch
      %336 = sbr.rel (0) target = $region33
    $region32: #{tpu_custom_call.1} parent=1 // pred_region
      %338 = vsyncadd [#allocation4], 0
      %s339 = sshll.u32 [#allocation3], 4
      %s340 = int_to_ptr.vmem [resolvable:$true] %s339
      %s341 = sshll.u32 %s5, 4
      %s342 = int_to_ptr.hbm [resolvable:$true] %s341
      %347 = dma.vmem_to_hbm [thread:$0]  %s340, 256, %s342, [#allocation4], 128, 128, 8
    $region33: #{tpu_custom_call.1} parent=1 // pred_fallthru
      _
    // Predicated region
    $region34: #{tpu_custom_call.1} parent=1 // pred_check
      _
    $region35: #{tpu_custom_call.1} parent=1 // pred_check_branch
      %349 = sbr.rel (0) target = $region37
    $region36: #{tpu_custom_call.1} parent=1 // pred_region
      %351 = dma.done [#allocation4], 256
    $region37: #{tpu_custom_call.1} parent=1 // pred_fallthru
      _
    %352 = vsyncpa [#allocation4], 1

</llo_original>
